<compile_context>
chip_gen: v7x
topology: tpu7x:2x2x1
jax: 0.10.0
libtpu: 0.0.40
codegen_flags: <defaults>
</compile_context>

<pallas_src>
import jax
import jax.numpy as jnp
from jax import lax
from jax.experimental import pallas as pl
from jax.experimental.pallas import tpu as pltpu


_INV_SQRT2 = 0.7071067811865476


def _round_up(n, m):
    return ((n + m - 1) // m) * m


def _gelu_exact(x):
    # PyTorch nn.GELU() default = exact erf-based GELU (computed in f32).
    return 0.5 * x * (1.0 + lax.erf(x * _INV_SQRT2))


def _gelu_tanh(x):
    # tanh-approx GELU: runs on the EUP slot (useful when VALU-bound on v5e).
    return jax.nn.gelu(x, approximate=True)


def _make_mlp_kernel(gelu_approx):
    act = _gelu_tanh if gelu_approx else _gelu_exact

    def kernel(x_ref, w1_ref, b1_ref, w2_ref, b2_ref, w3_ref, b3_ref, o_ref):
        # Fused 3-layer MLP on one batch tile. Matmuls run on the MXU with f32
        # accumulation; bias add + GELU stay in f32 on the VPU/EUP.
        x = x_ref[...]

        h1 = jnp.dot(x, w1_ref[...], preferred_element_type=jnp.float32) + b1_ref[...]
        h1 = act(h1)

        h2 = jnp.dot(h1.astype(w2_ref.dtype), w2_ref[...],
                     preferred_element_type=jnp.float32) + b2_ref[...]
        h2 = act(h2)

        out = jnp.dot(h2.astype(w3_ref.dtype), w3_ref[...],
                      preferred_element_type=jnp.float32) + b3_ref[...]
        o_ref[...] = out.astype(o_ref.dtype)

    return kernel


def _physical_vmem_bytes():
    # Per-generation physical VMEM (v5e/v6e: 128 MiB, v7x: 64 MiB per TC).
    try:
        return int(pltpu.get_tpu_info().vmem_capacity_bytes)
    except Exception:
        return 64 << 20  # conservative (v7x) fallback


def prepare_params(params, *, use_bf16=True):
    """One-time padding / casting of the weights (hoisted out of forward()).

    Feature dims are zero-padded to multiples of 128 (lane-dense matmuls and
    stores, full MXU tiles). Zero padding is numerically inert (zero rows/cols
    through matmul + bias, GELU(0)=0); padded output columns are sliced off in
    forward(). Weights are cast to bf16 by default (f32 accumulation in-kernel).
    """
    w1 = jnp.asarray(params["w1"], jnp.float32)
    w2 = jnp.asarray(params["w2"], jnp.float32)
    w3 = jnp.asarray(params["w3"], jnp.float32)
    b1 = jnp.asarray(params["b1"], jnp.float32)
    b2 = jnp.asarray(params["b2"], jnp.float32)
    b3 = jnp.asarray(params["b3"], jnp.float32)

    obs_dim, hidden_dim = w1.shape
    cond_dim = w3.shape[1]
    obs_p = _round_up(obs_dim, 128)
    hid_p = _round_up(hidden_dim, 128)
    cond_p = _round_up(cond_dim, 128)

    mm_dtype = jnp.bfloat16 if use_bf16 else jnp.float32

    w1_p = jnp.zeros((obs_p, hid_p), mm_dtype).at[:obs_dim, :hidden_dim].set(
        w1.astype(mm_dtype))
    w2_p = jnp.zeros((hid_p, hid_p), mm_dtype).at[:hidden_dim, :hidden_dim].set(
        w2.astype(mm_dtype))
    w3_p = jnp.zeros((hid_p, cond_p), mm_dtype).at[:hidden_dim, :cond_dim].set(
        w3.astype(mm_dtype))
    b1_p = jnp.zeros((1, hid_p), jnp.float32).at[0, :hidden_dim].set(b1)
    b2_p = jnp.zeros((1, hid_p), jnp.float32).at[0, :hidden_dim].set(b2)
    b3_p = jnp.zeros((1, cond_p), jnp.float32).at[0, :cond_dim].set(b3)

    return {
        "prepared": True,
        "mm_dtype": mm_dtype,
        "dims": (obs_dim, hidden_dim, cond_dim),
        "padded_dims": (obs_p, hid_p, cond_p),
        "w1": w1_p, "b1": b1_p,
        "w2": w2_p, "b2": b2_p,
        "w3": w3_p, "b3": b3_p,
    }


def flow_policy_forward(x, params, *, batch_tile=None, use_bf16=True,
                        gelu_approx=False, min_pallas_feature_dim=0):
    """Forward pass: conditioner = net(x).

    x: [B, obs_dim] float32.
    params: either raw params (w1[obs,hid], w2[hid,hid], w3[hid,cond], biases)
            or the output of prepare_params() (preferred for repeated calls:
            weights are padded/cast once, only x is padded per call).
    """
    if not (isinstance(params, dict) and params.get("prepared", False)):
        params = prepare_params(params, use_bf16=use_bf16)

    x = jnp.asarray(x, dtype=jnp.float32)
    B, obs_dim = x.shape
    obs_r, hid_r, cond_r = params["dims"]
    assert obs_dim == obs_r, "x feature dim does not match the parameters"
    obs_p, hid_p, cond_p = params["padded_dims"]
    mm_dtype = params["mm_dtype"]
    mm_bytes = jnp.dtype(mm_dtype).itemsize
    act = _gelu_tanh if gelu_approx else _gelu_exact

    # Optional plain-XLA path for degenerate feature dims (padding to 128 would
    # be pure waste). Off by default so this script always runs the kernel.
    if min_pallas_feature_dim > 0 and max(obs_r, hid_r, cond_r) < min_pallas_feature_dim:
        w1 = params["w1"][:obs_r, :hid_r].astype(jnp.float32)
        w2 = params["w2"][:hid_r, :hid_r].astype(jnp.float32)
        w3 = params["w3"][:hid_r, :cond_r].astype(jnp.float32)
        h = act(x @ w1 + params["b1"][0, :hid_r])
        h = act(h @ w2 + params["b2"][0, :hid_r])
        return h @ w3 + params["b3"][0, :cond_r]

    # ---- batch tile: bf16 sublane packing is (16,128) -> multiple of 16 ----
    align = 16 if mm_dtype == jnp.bfloat16 else 8
    if batch_tile is None:
        if B <= align:
            tb = align
        else:
            # Aim for >=2 grid steps (v7x has 2 TensorCores); cap for VMEM.
            tb = max(align, min(512, _round_up(-(-B // 2), align)))
    else:
        tb = batch_tile
        assert tb % align == 0, f"batch_tile must be a multiple of {align}"
    B_p = _round_up(B, tb)          # pad ragged batches with zero rows
    grid = (B_p // tb,)

    # ---- per-call padding of x only (weights were prepared once) ----
    x_p = jnp.zeros((B_p, obs_p), mm_dtype).at[:B, :obs_dim].set(x.astype(mm_dtype))

    # ---- cost estimate for the XLA scheduler ----
    flops = 2 * B_p * (obs_p * hid_p + hid_p * hid_p + hid_p * cond_p)
    transcendentals = 2 * B_p * hid_p     # one erf/tanh per hidden activation
    bytes_accessed = (
        B_p * obs_p * mm_bytes
        + (obs_p * hid_p + hid_p * hid_p + hid_p * cond_p) * mm_bytes
        + (2 * hid_p + cond_p) * 4
        + B_p * cond_p * 4
    )

    phys_vmem = _physical_vmem_bytes()
    kernel = _make_mlp_kernel(gelu_approx)

    def run(single_buffer_weights):
        wmode = ({"pipeline_mode": pl.Buffered(1)} if single_buffer_weights else {})
        wcount = 1 if single_buffer_weights else 2

        # ---- explicit VMEM budget: weights + double-buffered I/O tiles +
        #      in-kernel activations (h1/h2 f32 and their bf16 casts) ----
        weight_bytes = (obs_p * hid_p + hid_p * hid_p + hid_p * cond_p) * mm_bytes
        bias_bytes = (2 * hid_p + cond_p) * 4
        io_bytes = 2 * (tb * obs_p * mm_bytes + tb * cond_p * 4)
        act_bytes = (2 * tb * hid_p * 4            # h1, h2 in f32
                     + 2 * tb * hid_p * mm_bytes   # bf16 casts for matmul 2/3
                     + tb * cond_p * 4)            # f32 out before store
        needed = wcount * (weight_bytes + bias_bytes) + io_bytes + act_bytes + (4 << 20)
        vmem_limit = int(min(int(0.85 * phys_vmem), max(needed, 32 << 20)))

        return pl.pallas_call(
            kernel,
            out_shape=jax.ShapeDtypeStruct((B_p, cond_p), jnp.float32),
            grid_spec=pltpu.PrefetchScalarGridSpec(
                num_scalar_prefetch=0,
                grid=grid,
                in_specs=[
                    pl.BlockSpec((tb, obs_p), lambda i: (i, 0)),              # x tile
                    pl.BlockSpec((obs_p, hid_p), lambda i: (0, 0), **wmode),  # w1
                    pl.BlockSpec((1, hid_p), lambda i: (0, 0), **wmode),      # b1
                    pl.BlockSpec((hid_p, hid_p), lambda i: (0, 0), **wmode),  # w2
                    pl.BlockSpec((1, hid_p), lambda i: (0, 0), **wmode),      # b2
                    pl.BlockSpec((hid_p, cond_p), lambda i: (0, 0), **wmode), # w3
                    pl.BlockSpec((1, cond_p), lambda i: (0, 0), **wmode),     # b3
                ],
                out_specs=pl.BlockSpec((tb, cond_p), lambda i: (i, 0)),
            ),
            compiler_params=pltpu.CompilerParams(
                dimension_semantics=("parallel",),
                vmem_limit_bytes=vmem_limit,
            ),
            cost_estimate=pl.CostEstimate(
                flops=flops,
                transcendentals=transcendentals,
                bytes_accessed=bytes_accessed,
            ),
        )(x_p, params["w1"], params["b1"], params["w2"], params["b2"],
          params["w3"], params["b3"])

    try:
        out_padded = run(single_buffer_weights=True)
    except Exception:
        # Fallback if single-buffered pipeline_mode is rejected by this JAX/Mosaic.
        out_padded = run(single_buffer_weights=False)

    # Strip batch / feature padding.
    return out_padded[:B, :cond_r]


def init_params(key, obs_dim, cond_dim, hidden_dim):
    """Deterministic synthetic parameters.

    PyTorch nn.Linear stores weight as [out, in]; we store the transpose
    [in, out] so the kernel does x @ W + b directly (same math as x @ W.T + b).
    """
    k1, k2, k3, k4, k5, k6 = jax.random.split(key, 6)

    def uinit(k, fan_in, shape):
        bound = 1.0 / jnp.sqrt(fan_in)
        return jax.random.uniform(k, shape, jnp.float32, -bound, bound)

    return {
        "w1": uinit(k1, obs_dim, (obs_dim, hidden_dim)),
        "b1": uinit(k2, obs_dim, (hidden_dim,)),
        "w2": uinit(k3, hidden_dim, (hidden_dim, hidden_dim)),
        "b2": uinit(k4, hidden_dim, (hidden_dim,)),
        "w3": uinit(k5, hidden_dim, (hidden_dim, cond_dim)),
        "b3": uinit(k6, hidden_dim, (cond_dim,)),
    }


def _reference_forward(x, params):
    # Pure-JAX reference (exact erf-GELU, matches PyTorch nn.GELU default).
    def gelu(v):
        return 0.5 * v * (1.0 + lax.erf(v / jnp.sqrt(2.0)))

    h = gelu(x @ params["w1"] + params["b1"])
    h = gelu(h @ params["w2"] + params["b2"])
    return h @ params["w3"] + params["b3"]


if __name__ == "__main__":
    obs_dim, hidden_dim, cond_dim = 16, 32, 8
    batch = 8

    key = jax.random.PRNGKey(0)
    pkey, xkey = jax.random.split(key)
    params = init_params(pkey, obs_dim, cond_dim, hidden_dim)
    x = jax.random.normal(xkey, (batch, obs_dim), dtype=jnp.float32)

    ref = _reference_forward(x, params)

    # Default (recommended) path: weights padded/cast once, bf16 matmul inputs,
    # f32 accumulation + f32 bias/GELU.
    prepared_bf16 = prepare_params(params, use_bf16=True)
    out_bf16 = jax.block_until_ready(flow_policy_forward(x, prepared_bf16))
    assert out_bf16.shape == (batch, cond_dim)
    assert jnp.allclose(out_bf16, ref, atol=3e-2, rtol=3e-2), "bf16 path mismatch"

    # Full-precision path: matches the PyTorch fp32 forward tightly.
    prepared_f32 = prepare_params(params, use_bf16=False)
    out_f32 = jax.block_until_ready(flow_policy_forward(x, prepared_f32))
    assert out_f32.shape == (batch, cond_dim)
    assert jnp.allclose(out_f32, ref, atol=1e-5, rtol=1e-5), "f32 path mismatch"

    print("KERNEL_OK")
</pallas_src>

<mosaic_0001>
module attributes {stable_mosaic.version = 11 : i64} {
  func.func @kernel(%arg0: i32, %arg1: memref<16x128xbf16, #tpu.memory_space<vmem>>, %arg2: memref<128x128xbf16, #tpu.memory_space<vmem>>, %arg3: memref<1x128xf32, #tpu.memory_space<vmem>>, %arg4: memref<128x128xbf16, #tpu.memory_space<vmem>>, %arg5: memref<1x128xf32, #tpu.memory_space<vmem>>, %arg6: memref<128x128xbf16, #tpu.memory_space<vmem>>, %arg7: memref<1x128xf32, #tpu.memory_space<vmem>>, %arg8: memref<16x128xf32, #tpu.memory_space<vmem>>) attributes {dimension_semantics = [#tpu.dimension_semantics<parallel>], iteration_bounds = array<i64: 1>, scalar_prefetch = 0 : i64, scratch_operands = 0 : i64, tpu.core_type = #tpu.core_type<tc>, window_params = [{transform_indices = @transform_0, window_bounds = array<i64: 16, 128>}, {pipeline_mode = #tpu.pipeline_mode<synchronous>, transform_indices = @transform_1, window_bounds = array<i64: 128, 128>}, {pipeline_mode = #tpu.pipeline_mode<synchronous>, transform_indices = @transform_2, window_bounds = array<i64: 1, 128>}, {pipeline_mode = #tpu.pipeline_mode<synchronous>, transform_indices = @transform_3, window_bounds = array<i64: 128, 128>}, {pipeline_mode = #tpu.pipeline_mode<synchronous>, transform_indices = @transform_4, window_bounds = array<i64: 1, 128>}, {pipeline_mode = #tpu.pipeline_mode<synchronous>, transform_indices = @transform_5, window_bounds = array<i64: 128, 128>}, {pipeline_mode = #tpu.pipeline_mode<synchronous>, transform_indices = @transform_6, window_bounds = array<i64: 1, 128>}, {transform_indices = @transform_7, window_bounds = array<i64: 16, 128>}]} {
    %c0 = arith.constant 0 : index
    %c0_0 = arith.constant 0 : index
    %0 = vector.load %arg1[%c0, %c0_0] : memref<16x128xbf16, #tpu.memory_space<vmem>>, vector<16x128xbf16>
    %c0_1 = arith.constant 0 : index
    %c0_2 = arith.constant 0 : index
    %1 = vector.load %arg2[%c0_1, %c0_2] : memref<128x128xbf16, #tpu.memory_space<vmem>>, vector<128x128xbf16>
    %cst = arith.constant dense<0.000000e+00> : vector<16x128xf32>
    %2 = tpu.matmul %0, %1, %cst {dimension_numbers = #tpu.dot_dimension_numbers<[1], [0], [0], [1], [0, 0, 1, 1], [], []>} : vector<16x128xbf16>, vector<128x128xbf16>, vector<16x128xf32> -> vector<16x128xf32>
    %c0_3 = arith.constant 0 : index
    %c0_4 = arith.constant 0 : index
    %3 = vector.load %arg3[%c0_3, %c0_4] : memref<1x128xf32, #tpu.memory_space<vmem>>, vector<1x128xf32>
    %4 = vector.broadcast %3 : vector<1x128xf32> to vector<16x128xf32>
    %5 = arith.addf %2, %4 : vector<16x128xf32>
    %cst_5 = arith.constant 5.000000e-01 : f32
    %6 = vector.broadcast %cst_5 : f32 to vector<16x128xf32>
    %7 = arith.mulf %6, %5 : vector<16x128xf32>
    %cst_6 = arith.constant 0.707106769 : f32
    %8 = vector.broadcast %cst_6 : f32 to vector<16x128xf32>
    %9 = arith.mulf %5, %8 : vector<16x128xf32>
    %10 = math.erf %9 : vector<16x128xf32>
    %cst_7 = arith.constant 1.000000e+00 : f32
    %11 = vector.broadcast %cst_7 : f32 to vector<16x128xf32>
    %12 = arith.addf %11, %10 : vector<16x128xf32>
    %13 = arith.mulf %7, %12 : vector<16x128xf32>
    %14 = arith.truncf %13 : vector<16x128xf32> to vector<16x128xbf16>
    %c0_8 = arith.constant 0 : index
    %c0_9 = arith.constant 0 : index
    %15 = vector.load %arg4[%c0_8, %c0_9] : memref<128x128xbf16, #tpu.memory_space<vmem>>, vector<128x128xbf16>
    %cst_10 = arith.constant dense<0.000000e+00> : vector<16x128xf32>
    %16 = tpu.matmul %14, %15, %cst_10 {dimension_numbers = #tpu.dot_dimension_numbers<[1], [0], [0], [1], [0, 0, 1, 1], [], []>} : vector<16x128xbf16>, vector<128x128xbf16>, vector<16x128xf32> -> vector<16x128xf32>
    %c0_11 = arith.constant 0 : index
    %c0_12 = arith.constant 0 : index
    %17 = vector.load %arg5[%c0_11, %c0_12] : memref<1x128xf32, #tpu.memory_space<vmem>>, vector<1x128xf32>
    %18 = vector.broadcast %17 : vector<1x128xf32> to vector<16x128xf32>
    %19 = arith.addf %16, %18 : vector<16x128xf32>
    %cst_13 = arith.constant 5.000000e-01 : f32
    %20 = vector.broadcast %cst_13 : f32 to vector<16x128xf32>
    %21 = arith.mulf %20, %19 : vector<16x128xf32>
    %cst_14 = arith.constant 0.707106769 : f32
    %22 = vector.broadcast %cst_14 : f32 to vector<16x128xf32>
    %23 = arith.mulf %19, %22 : vector<16x128xf32>
    %24 = math.erf %23 : vector<16x128xf32>
    %cst_15 = arith.constant 1.000000e+00 : f32
    %25 = vector.broadcast %cst_15 : f32 to vector<16x128xf32>
    %26 = arith.addf %25, %24 : vector<16x128xf32>
    %27 = arith.mulf %21, %26 : vector<16x128xf32>
    %28 = arith.truncf %27 : vector<16x128xf32> to vector<16x128xbf16>
    %c0_16 = arith.constant 0 : index
    %c0_17 = arith.constant 0 : index
    %29 = vector.load %arg6[%c0_16, %c0_17] : memref<128x128xbf16, #tpu.memory_space<vmem>>, vector<128x128xbf16>
    %cst_18 = arith.constant dense<0.000000e+00> : vector<16x128xf32>
    %30 = tpu.matmul %28, %29, %cst_18 {dimension_numbers = #tpu.dot_dimension_numbers<[1], [0], [0], [1], [0, 0, 1, 1], [], []>} : vector<16x128xbf16>, vector<128x128xbf16>, vector<16x128xf32> -> vector<16x128xf32>
    %c0_19 = arith.constant 0 : index
    %c0_20 = arith.constant 0 : index
    %31 = vector.load %arg7[%c0_19, %c0_20] : memref<1x128xf32, #tpu.memory_space<vmem>>, vector<1x128xf32>
    %32 = vector.broadcast %31 : vector<1x128xf32> to vector<16x128xf32>
    %33 = arith.addf %30, %32 : vector<16x128xf32>
    %c0_21 = arith.constant 0 : index
    %c0_22 = arith.constant 0 : index
    %34 = vector.load %arg8[%c0_21, %c0_22] : memref<16x128xf32, #tpu.memory_space<vmem>>, vector<16x128xf32>
    tpu.vector_store %arg8[%c0_21, %c0_22], %33 {strides = array<i32>} : memref<16x128xf32, #tpu.memory_space<vmem>>, vector<16x128xf32>,
    return
  }
  func.func @transform_0(%arg0: i32) -> (i32, i32) {
    %c0_i32 = arith.constant 0 : i32
    %c0_i32_0 = arith.constant 0 : i32
    return %arg0, %c0_i32 : i32, i32
  }
  func.func @transform_1(%arg0: i32) -> (i32, i32) {
    %c0_i32 = arith.constant 0 : i32
    %c0_i32_0 = arith.constant 0 : i32
    %c0_i32_1 = arith.constant 0 : i32
    return %c0_i32, %c0_i32_0 : i32, i32
  }
  func.func @transform_2(%arg0: i32) -> (i32, i32) {
    %c0_i32 = arith.constant 0 : i32
    %c0_i32_0 = arith.constant 0 : i32
    %c0_i32_1 = arith.constant 0 : i32
    return %c0_i32, %c0_i32_0 : i32, i32
  }
  func.func @transform_3(%arg0: i32) -> (i32, i32) {
    %c0_i32 = arith.constant 0 : i32
    %c0_i32_0 = arith.constant 0 : i32
    %c0_i32_1 = arith.constant 0 : i32
    return %c0_i32, %c0_i32_0 : i32, i32
  }
  func.func @transform_4(%arg0: i32) -> (i32, i32) {
    %c0_i32 = arith.constant 0 : i32
    %c0_i32_0 = arith.constant 0 : i32
    %c0_i32_1 = arith.constant 0 : i32
    return %c0_i32, %c0_i32_0 : i32, i32
  }
  func.func @transform_5(%arg0: i32) -> (i32, i32) {
    %c0_i32 = arith.constant 0 : i32
    %c0_i32_0 = arith.constant 0 : i32
    %c0_i32_1 = arith.constant 0 : i32
    return %c0_i32, %c0_i32_0 : i32, i32
  }
  func.func @transform_6(%arg0: i32) -> (i32, i32) {
    %c0_i32 = arith.constant 0 : i32
    %c0_i32_0 = arith.constant 0 : i32
    %c0_i32_1 = arith.constant 0 : i32
    return %c0_i32, %c0_i32_0 : i32, i32
  }
  func.func @transform_7(%arg0: i32) -> (i32, i32) {
    %c0_i32 = arith.constant 0 : i32
    %c0_i32_0 = arith.constant 0 : i32
    return %arg0, %c0_i32 : i32, i32
  }
}

module attributes {stable_mosaic.version = 11 : i64} {
  func.func @kernel(%arg0: i32, %arg1: memref<16x128xbf16, #tpu.memory_space<vmem>>, %arg2: memref<128x128xbf16, #tpu.memory_space<vmem>>, %arg3: memref<1x128xf32, #tpu.memory_space<vmem>>, %arg4: memref<128x128xbf16, #tpu.memory_space<vmem>>, %arg5: memref<1x128xf32, #tpu.memory_space<vmem>>, %arg6: memref<128x128xbf16, #tpu.memory_space<vmem>>, %arg7: memref<1x128xf32, #tpu.memory_space<vmem>>, %arg8: memref<16x128xf32, #tpu.memory_space<vmem>>) attributes {dimension_semantics = [#tpu.dimension_semantics<parallel>], iteration_bounds = array<i64: 1>, scalar_prefetch = 0 : i64, scratch_operands = 0 : i64, tpu.core_type = #tpu.core_type<tc>, window_params = [{transform_indices = @transform_0, window_bounds = array<i64: 16, 128>}, {pipeline_mode = #tpu.pipeline_mode<synchronous>, transform_indices = @transform_1, window_bounds = array<i64: 128, 128>}, {pipeline_mode = #tpu.pipeline_mode<synchronous>, transform_indices = @transform_2, window_bounds = array<i64: 1, 128>}, {pipeline_mode = #tpu.pipeline_mode<synchronous>, transform_indices = @transform_3, window_bounds = array<i64: 128, 128>}, {pipeline_mode = #tpu.pipeline_mode<synchronous>, transform_indices = @transform_4, window_bounds = array<i64: 1, 128>}, {pipeline_mode = #tpu.pipeline_mode<synchronous>, transform_indices = @transform_5, window_bounds = array<i64: 128, 128>}, {pipeline_mode = #tpu.pipeline_mode<synchronous>, transform_indices = @transform_6, window_bounds = array<i64: 1, 128>}, {transform_indices = @transform_7, window_bounds = array<i64: 16, 128>}]} {
    %c0 = arith.constant 0 : index
    %c0_0 = arith.constant 0 : index
    %0 = vector.load %arg1[%c0, %c0_0] : memref<16x128xbf16, #tpu.memory_space<vmem>>, vector<16x128xbf16>
    %c0_1 = arith.constant 0 : index
    %c0_2 = arith.constant 0 : index
    %1 = vector.load %arg2[%c0_1, %c0_2] : memref<128x128xbf16, #tpu.memory_space<vmem>>, vector<128x128xbf16>
    %cst = arith.constant dense<0.000000e+00> : vector<16x128xf32>
    %2 = tpu.matmul %0, %1, %cst {dimension_numbers = #tpu.dot_dimension_numbers<[1], [0], [0], [1], [0, 0, 1, 1], [], []>} : vector<16x128xbf16>, vector<128x128xbf16>, vector<16x128xf32> -> vector<16x128xf32>
    %c0_3 = arith.constant 0 : index
    %c0_4 = arith.constant 0 : index
    %3 = vector.load %arg3[%c0_3, %c0_4] : memref<1x128xf32, #tpu.memory_space<vmem>>, vector<1x128xf32>
    %4 = vector.broadcast %3 : vector<1x128xf32> to vector<16x128xf32>
    %5 = arith.addf %2, %4 : vector<16x128xf32>
    %cst_5 = arith.constant 5.000000e-01 : f32
    %6 = vector.broadcast %cst_5 : f32 to vector<16x128xf32>
    %7 = arith.mulf %6, %5 : vector<16x128xf32>
    %cst_6 = arith.constant 0.707106769 : f32
    %8 = vector.broadcast %cst_6 : f32 to vector<16x128xf32>
    %9 = arith.mulf %5, %8 : vector<16x128xf32>
    %10 = math.erf %9 : vector<16x128xf32>
    %cst_7 = arith.constant 1.000000e+00 : f32
    %11 = vector.broadcast %cst_7 : f32 to vector<16x128xf32>
    %12 = arith.addf %11, %10 : vector<16x128xf32>
    %13 = arith.mulf %7, %12 : vector<16x128xf32>
    %14 = arith.truncf %13 : vector<16x128xf32> to vector<16x128xbf16>
    %c0_8 = arith.constant 0 : index
    %c0_9 = arith.constant 0 : index
    %15 = vector.load %arg4[%c0_8, %c0_9] : memref<128x128xbf16, #tpu.memory_space<vmem>>, vector<128x128xbf16>
    %cst_10 = arith.constant dense<0.000000e+00> : vector<16x128xf32>
    %16 = tpu.matmul %14, %15, %cst_10 {dimension_numbers = #tpu.dot_dimension_numbers<[1], [0], [0], [1], [0, 0, 1, 1], [], []>} : vector<16x128xbf16>, vector<128x128xbf16>, vector<16x128xf32> -> vector<16x128xf32>
    %c0_11 = arith.constant 0 : index
    %c0_12 = arith.constant 0 : index
    %17 = vector.load %arg5[%c0_11, %c0_12] : memref<1x128xf32, #tpu.memory_space<vmem>>, vector<1x128xf32>
    %18 = vector.broadcast %17 : vector<1x128xf32> to vector<16x128xf32>
    %19 = arith.addf %16, %18 : vector<16x128xf32>
    %cst_13 = arith.constant 5.000000e-01 : f32
    %20 = vector.broadcast %cst_13 : f32 to vector<16x128xf32>
    %21 = arith.mulf %20, %19 : vector<16x128xf32>
    %cst_14 = arith.constant 0.707106769 : f32
    %22 = vector.broadcast %cst_14 : f32 to vector<16x128xf32>
    %23 = arith.mulf %19, %22 : vector<16x128xf32>
    %24 = math.erf %23 : vector<16x128xf32>
    %cst_15 = arith.constant 1.000000e+00 : f32
    %25 = vector.broadcast %cst_15 : f32 to vector<16x128xf32>
    %26 = arith.addf %25, %24 : vector<16x128xf32>
    %27 = arith.mulf %21, %26 : vector<16x128xf32>
    %28 = arith.truncf %27 : vector<16x128xf32> to vector<16x128xbf16>
    %c0_16 = arith.constant 0 : index
    %c0_17 = arith.constant 0 : index
    %29 = vector.load %arg6[%c0_16, %c0_17] : memref<128x128xbf16, #tpu.memory_space<vmem>>, vector<128x128xbf16>
    %cst_18 = arith.constant dense<0.000000e+00> : vector<16x128xf32>
    %30 = tpu.matmul %28, %29, %cst_18 {dimension_numbers = #tpu.dot_dimension_numbers<[1], [0], [0], [1], [0, 0, 1, 1], [], []>} : vector<16x128xbf16>, vector<128x128xbf16>, vector<16x128xf32> -> vector<16x128xf32>
    %c0_19 = arith.constant 0 : index
    %c0_20 = arith.constant 0 : index
    %31 = vector.load %arg7[%c0_19, %c0_20] : memref<1x128xf32, #tpu.memory_space<vmem>>, vector<1x128xf32>
    %32 = vector.broadcast %31 : vector<1x128xf32> to vector<16x128xf32>
    %33 = arith.addf %30, %32 : vector<16x128xf32>
    %c0_21 = arith.constant 0 : index
    %c0_22 = arith.constant 0 : index
    %34 = vector.load %arg8[%c0_21, %c0_22] : memref<16x128xf32, #tpu.memory_space<vmem>>, vector<16x128xf32>
    tpu.vector_store %arg8[%c0_21, %c0_22], %33 {strides = array<i32>} : memref<16x128xf32, #tpu.memory_space<vmem>>, vector<16x128xf32>,
    return
  }
  func.func @transform_0(%arg0: i32) -> (i32, i32) {
    %c0_i32 = arith.constant 0 : i32
    %c0_i32_0 = arith.constant 0 : i32
    return %arg0, %c0_i32 : i32, i32
  }
  func.func @transform_1(%arg0: i32) -> (i32, i32) {
    %c0_i32 = arith.constant 0 : i32
    %c0_i32_0 = arith.constant 0 : i32
    %c0_i32_1 = arith.constant 0 : i32
    return %c0_i32, %c0_i32_0 : i32, i32
  }
  func.func @transform_2(%arg0: i32) -> (i32, i32) {
    %c0_i32 = arith.constant 0 : i32
    %c0_i32_0 = arith.constant 0 : i32
    %c0_i32_1 = arith.constant 0 : i32
    return %c0_i32, %c0_i32_0 : i32, i32
  }
  func.func @transform_3(%arg0: i32) -> (i32, i32) {
    %c0_i32 = arith.constant 0 : i32
    %c0_i32_0 = arith.constant 0 : i32
    %c0_i32_1 = arith.constant 0 : i32
    return %c0_i32, %c0_i32_0 : i32, i32
  }
  func.func @transform_4(%arg0: i32) -> (i32, i32) {
    %c0_i32 = arith.constant 0 : i32
    %c0_i32_0 = arith.constant 0 : i32
    %c0_i32_1 = arith.constant 0 : i32
    return %c0_i32, %c0_i32_0 : i32, i32
  }
  func.func @transform_5(%arg0: i32) -> (i32, i32) {
    %c0_i32 = arith.constant 0 : i32
    %c0_i32_0 = arith.constant 0 : i32
    %c0_i32_1 = arith.constant 0 : i32
    return %c0_i32, %c0_i32_0 : i32, i32
  }
  func.func @transform_6(%arg0: i32) -> (i32, i32) {
    %c0_i32 = arith.constant 0 : i32
    %c0_i32_0 = arith.constant 0 : i32
    %c0_i32_1 = arith.constant 0 : i32
    return %c0_i32, %c0_i32_0 : i32, i32
  }
  func.func @transform_7(%arg0: i32) -> (i32, i32) {
    %c0_i32 = arith.constant 0 : i32
    %c0_i32_0 = arith.constant 0 : i32
    return %arg0, %c0_i32 : i32, i32
  }
}

</mosaic_0001>

<llo_original>
// kernel: tpu_custom_call.1
$region0: #{tpu_custom_call.1}
  #allocation0 [shape = 'u32[]', space=smem, size = 0x4, offset = 0x4, fixed_abs, tag = 'smem constant byte address 0x4 - core index']
  #allocation1 [shape = 'u32[144,128]{1,0:T(1,128)}', space=vmem, size = 0x12000, scoped, tag = 'internal scratch']
  %s0 = inlined_call_operand.hbm [shape: bf16[16,128], index: 0, kind: input, shape index: {}]
  %s1 = inlined_call_operand.hbm [shape: bf16[128,128], index: 1, kind: input, shape index: {}]
  %s2 = inlined_call_operand.vmem [shape: f32[1,128], index: 2, kind: input, shape index: {}]
  %s3 = inlined_call_operand.hbm [shape: bf16[128,128], index: 3, kind: input, shape index: {}]
  %s4 = inlined_call_operand.vmem [shape: f32[1,128], index: 4, kind: input, shape index: {}]
  %s5 = inlined_call_operand.hbm [shape: bf16[128,128], index: 5, kind: input, shape index: {}]
  %s6 = inlined_call_operand.vmem [shape: f32[1,128], index: 6, kind: input, shape index: {}]
  %s7 = inlined_call_operand.hbm [shape: f32[16,128], index: 7, kind: output, shape index: {}]
  %s8 = sld [smem:[#allocation0]]
  $region54: #{tpu_custom_call.1} parent=0
    _
  %s10 = ssub.s32 1, %s8
  %s11 = scalar_select 0, %s10, %s8
  $region1: #{tpu_custom_call.1} parent=0
    #allocation2 [shape = 'u8[4096]{0}', space=vmem, size = 0x1000, scoped, tag = 'input window, operand 0, single buffered']
    #allocation3 [shape = 's32[1]{0}', space=sflag, size = 0x4, scoped, tag = 'scoped memory for tpu_custom_call.1']
    #allocation4 [shape = 's32[1]{0}', space=sflag, size = 0x4, scoped, tag = 'scoped memory for tpu_custom_call.1']
    #allocation5 [shape = 'u8[32768]{0}', space=vmem, size = 0x8000, scoped, tag = 'input window, operand 1, single buffered']
    #allocation6 [shape = 's32[1]{0}', space=sflag, size = 0x4, scoped, tag = 'scoped memory for tpu_custom_call.1']
    #allocation7 [shape = 'u8[32768]{0}', space=vmem, size = 0x8000, scoped, tag = 'input window, operand 3, single buffered']
    #allocation8 [shape = 'u8[32768]{0}', space=vmem, size = 0x8000, scoped, tag = 'input window, operand 5, single buffered']
    #allocation9 [shape = 's32[1]{0}', space=sflag, size = 0x4, scoped, tag = 'scoped memory for tpu_custom_call.1']
    #allocation10 [shape = 'u8[8192]{0}', space=vmem, size = 0x2000, scoped, tag = 'output window, operand 0, single buffered']
    %12 = vsyncpa [#allocation3], 0
    %13 = vsyncpa [#allocation6], 0
    %14 = vsyncpa [#allocation9], 0
    %15 = vsyncpa [#allocation4], 0
    // Predicated region
    $region2: #{tpu_custom_call.1} parent=1 // pred_check
      _
    $region3: #{tpu_custom_call.1} parent=1 // pred_check_branch
      %17 = sbr.rel (0) target = $region5
    $region4: #{tpu_custom_call.1} parent=1 // pred_region
      %s19 = ssub.s32 128, 128
      %20 = vsyncadd [#allocation3], %s19
      %s21 = sshll.u32 [#allocation2], 4
      %s22 = int_to_ptr.vmem [resolvable:$true] %s21
      %27 = dma.hbm_to_vmem [thread:$0]  %s0, 128, %s22, [#allocation3], 64, 64, 4
    $region5: #{tpu_custom_call.1} parent=1 // pred_fallthru
      _
    // Predicated region
    $region6: #{tpu_custom_call.1} parent=1 // pred_check
      _
    $region7: #{tpu_custom_call.1} parent=1 // pred_check_branch
      %29 = sbr.rel (0) target = $region9
    $region8: #{tpu_custom_call.1} parent=1 // pred_region
      %s31 = ssub.s32 1024, 1024
      %32 = vsyncadd [#allocation6], %s31
      %s33 = sshll.u32 [#allocation5], 4
      %s34 = int_to_ptr.vmem [resolvable:$true] %s33
      %39 = dma.hbm_to_vmem [thread:$0]  %s1, 1024, %s34, [#allocation6], 64, 64, 4
    $region9: #{tpu_custom_call.1} parent=1 // pred_fallthru
      _
    // Predicated region
    $region10: #{tpu_custom_call.1} parent=1 // pred_check
      _
    $region11: #{tpu_custom_call.1} parent=1 // pred_check_branch
      %41 = sbr.rel (0) target = $region13
    $region12: #{tpu_custom_call.1} parent=1 // pred_region
      _
    $region13: #{tpu_custom_call.1} parent=1 // pred_fallthru
      _
    // Predicated region
    $region14: #{tpu_custom_call.1} parent=1 // pred_check
      _
    $region15: #{tpu_custom_call.1} parent=1 // pred_check_branch
      %43 = sbr.rel (0) target = $region17
    $region16: #{tpu_custom_call.1} parent=1 // pred_region
      %s45 = ssub.s32 1024, 1024
      %46 = vsyncadd [#allocation6], %s45
      %s47 = sshll.u32 [#allocation7], 4
      %s48 = int_to_ptr.vmem [resolvable:$true] %s47
      %53 = dma.hbm_to_vmem [thread:$0]  %s3, 1024, %s48, [#allocation6], 64, 64, 4
    $region17: #{tpu_custom_call.1} parent=1 // pred_fallthru
      _
    // Predicated region
    $region18: #{tpu_custom_call.1} parent=1 // pred_check
      _
    $region19: #{tpu_custom_call.1} parent=1 // pred_check_branch
      %55 = sbr.rel (0) target = $region21
    $region20: #{tpu_custom_call.1} parent=1 // pred_region
      _
    $region21: #{tpu_custom_call.1} parent=1 // pred_fallthru
      _
    // Predicated region
    $region22: #{tpu_custom_call.1} parent=1 // pred_check
      _
    $region23: #{tpu_custom_call.1} parent=1 // pred_check_branch
      %57 = sbr.rel (0) target = $region25
    $region24: #{tpu_custom_call.1} parent=1 // pred_region
      %s59 = ssub.s32 1024, 1024
      %60 = vsyncadd [#allocation9], %s59
      %s61 = sshll.u32 [#allocation8], 4
      %s62 = int_to_ptr.vmem [resolvable:$true] %s61
      %67 = dma.hbm_to_vmem [thread:$0]  %s5, 1024, %s62, [#allocation9], 64, 64, 4
    $region25: #{tpu_custom_call.1} parent=1 // pred_fallthru
      _
    // Predicated region
    $region26: #{tpu_custom_call.1} parent=1 // pred_check
      _
    $region27: #{tpu_custom_call.1} parent=1 // pred_check_branch
      %69 = sbr.rel (0) target = $region29
    $region28: #{tpu_custom_call.1} parent=1 // pred_region
      _
    $region29: #{tpu_custom_call.1} parent=1 // pred_fallthru
      _
    // Predicated region
    $region30: #{tpu_custom_call.1} parent=1 // pred_check
      _
    $region31: #{tpu_custom_call.1} parent=1 // pred_check_branch
      %71 = sbr.rel (0) target = $region33
    $region32: #{tpu_custom_call.1} parent=1 // pred_region
      %72 = dma.done [#allocation3], 128
    $region33: #{tpu_custom_call.1} parent=1 // pred_fallthru
      _
    // Predicated region
    $region34: #{tpu_custom_call.1} parent=1 // pred_check
      _
    $region35: #{tpu_custom_call.1} parent=1 // pred_check_branch
      %74 = sbr.rel (0) target = $region37
    $region36: #{tpu_custom_call.1} parent=1 // pred_region
      %75 = dma.done [#allocation6], 1024
    $region37: #{tpu_custom_call.1} parent=1 // pred_fallthru
      _
    // Predicated region
    $region38: #{tpu_custom_call.1} parent=1 // pred_check
      _
    $region39: #{tpu_custom_call.1} parent=1 // pred_check_branch
      %77 = sbr.rel (0) target = $region41
    $region40: #{tpu_custom_call.1} parent=1 // pred_region
      %78 = dma.done [#allocation6], 1024
    $region41: #{tpu_custom_call.1} parent=1 // pred_fallthru
      _
    // Predicated region
    $region42: #{tpu_custom_call.1} parent=1 // pred_check
      _
    $region43: #{tpu_custom_call.1} parent=1 // pred_check_branch
      %80 = sbr.rel (0) target = $region45
    $region44: #{tpu_custom_call.1} parent=1 // pred_region
      %81 = dma.done [#allocation9], 1024
    $region45: #{tpu_custom_call.1} parent=1 // pred_fallthru
      _
    %v83 = vld [vmem:[#allocation2] sm:$0xf]
    %v84 = vld [vmem:[#allocation2 + $0x4] sm:$0xf]
    %v85 = vld [vmem:[#allocation5] sm:$0xf]
    %v86 = vld [vmem:[#allocation5 + $0x4] sm:$0xf]
    %v87 = vld [vmem:[#allocation5 + $0x8] sm:$0xf]
    %v88 = vld [vmem:[#allocation5 + $0xc] sm:$0xf]
    %v89 = vld [vmem:[#allocation5 + $0x10] sm:$0xf]
    %v90 = vld [vmem:[#allocation5 + $0x14] sm:$0xf]
    %v91 = vld [vmem:[#allocation5 + $0x18] sm:$0xf]
    %v92 = vld [vmem:[#allocation5 + $0x1c] sm:$0xf]
    %v93 = vld [vmem:[#allocation5 + $0x20] sm:$0xf]
    %v94 = vld [vmem:[#allocation5 + $0x24] sm:$0xf]
    %v95 = vld [vmem:[#allocation5 + $0x28] sm:$0xf]
    %v96 = vld [vmem:[#allocation5 + $0x2c] sm:$0xf]
    %v97 = vld [vmem:[#allocation5 + $0x30] sm:$0xf]
    %v98 = vld [vmem:[#allocation5 + $0x34] sm:$0xf]
    %v99 = vld [vmem:[#allocation5 + $0x38] sm:$0xf]
    %v100 = vld [vmem:[#allocation5 + $0x3c] sm:$0xf]
    %v101 = vld [vmem:[%s2] sm:$0x1]
    %v103 = vlaneseq
    %v104 = vshrl.u32 %v103, 7
    %v105 = vsub.s32 0, %v104
    %v106 = vrot.slane %v101, %v105
    %v110 = vunpack.c.l.b16 %v83
    %v111 = vunpack.c.l.b16 %v84
    %v112 = vpack.c.b16 %v111, %v110
    %v130 = vunpack.c.l.b16 %v85
    %v131 = vunpack.c.l.b16 %v86
    %v132 = vunpack.c.l.b16 %v87
    %v133 = vunpack.c.l.b16 %v88
    %v134 = vunpack.c.l.b16 %v89
    %v135 = vunpack.c.l.b16 %v90
    %v136 = vunpack.c.l.b16 %v91
    %v137 = vunpack.c.l.b16 %v92
    %v138 = vunpack.c.l.b16 %v93
    %v139 = vunpack.c.l.b16 %v94
    %v140 = vunpack.c.l.b16 %v95
    %v141 = vunpack.c.l.b16 %v96
    %v142 = vunpack.c.l.b16 %v97
    %v143 = vunpack.c.l.b16 %v98
    %v144 = vunpack.c.l.b16 %v99
    %v145 = vunpack.c.l.b16 %v100
    %v146 = vpack.c.b16 %v131, %v130
    %v147 = vpack.c.b16 %v133, %v132
    %v148 = vpack.c.b16 %v135, %v134
    %v149 = vpack.c.b16 %v137, %v136
    %v150 = vpack.c.b16 %v139, %v138
    %v151 = vpack.c.b16 %v141, %v140
    %v152 = vpack.c.b16 %v143, %v142
    %v153 = vpack.c.b16 %v145, %v144
    %162 = vmatprep.subr.bf16.mxu0 0
    %163 = vmatpush1.bf16.msra.mxu0 %v146
    %164 = vmatprep.subr.bf16.mxu0 0
    %165 = vmatpush1.bf16.msra.mxu0 %v147
    %166 = vmatprep.subr.bf16.mxu0 0
    %167 = vmatpush1.bf16.msra.mxu0 %v148
    %168 = vmatprep.subr.bf16.mxu0 0
    %169 = vmatpush1.bf16.msra.mxu0 %v149
    %170 = vmatprep.subr.bf16.mxu0 0
    %171 = vmatpush1.bf16.msra.mxu0 %v150
    %172 = vmatprep.subr.bf16.mxu0 0
    %173 = vmatpush1.bf16.msra.mxu0 %v151
    %174 = vmatprep.subr.bf16.mxu0 0
    %175 = vmatpush1.bf16.msra.mxu0 %v152
    %176 = vmatprep.subr.bf16.mxu0 0
    %177 = vmatpush1.bf16.msra.mxu0 %v153
    %178 = vmatprep.subr.bf16.mxu0 0
    %179 = vmatpush1.bf16.msra.mxu0 0
    %180 = vmatprep.subr.bf16.mxu0 0
    %181 = vmatpush1.bf16.msra.mxu0 0
    %182 = vmatprep.subr.bf16.mxu0 0
    %183 = vmatpush1.bf16.msra.mxu0 0
    %184 = vmatprep.subr.bf16.mxu0 0
    %185 = vmatpush1.bf16.msra.mxu0 0
    %186 = vmatprep.subr.bf16.mxu0 0
    %187 = vmatpush1.bf16.msra.mxu0 0
    %188 = vmatprep.subr.bf16.mxu0 0
    %189 = vmatpush1.bf16.msra.mxu0 0
    %190 = vmatprep.subr.bf16.mxu0 0
    %191 = vmatpush1.bf16.msra.mxu0 0
    %192 = vmatprep.subr.bf16.mxu0 0
    %193 = vmatpush1.bf16.msra.mxu0 0
    %194 = vmatprep.mubr.bf16.mxu0 0
    %195 = vmatmul.mubr.bf16.gmra.mrb[0].mxu0 %v112
    %v196 = vpop.f32.mrb[0].mxu0
    %v197 = vadd.f32 %v106, %v196
    %v198 = vpop.f32.mrb[0].mxu0
    %v199 = vpop.f32.mrb[0].mxu0
    %v200 = vadd.f32 %v106, %v199
    %v201 = vpop.f32.mrb[0].mxu0
    %202 = vdwg.mxu0
    %v203 = vmul.f32 %v197, 0.5
    %v204 = vmul.f32 %v200, 0.5
    %v205 = vmul.f32 %v197, 0.70710677
    %v206 = vmul.f32 %v200, 0.70710677
    %v207 = verf.f32.pop %v205
    %v208 = verf.f32.pop %v206
    %v209 = vadd.f32 %v207, 1.0
    %v210 = vadd.f32 %v208, 1.0
    %v211 = vmul.f32 %v203, %v209
    %v212 = vmul.f32 %v204, %v210
    %v213 = vpack.c.bf16 %v212, %v211
    %v214 = vld [vmem:[#allocation7] sm:$0xf]
    %v215 = vld [vmem:[#allocation7 + $0x4] sm:$0xf]
    %v216 = vld [vmem:[#allocation7 + $0x8] sm:$0xf]
    %v217 = vld [vmem:[#allocation7 + $0xc] sm:$0xf]
    %v218 = vld [vmem:[#allocation7 + $0x10] sm:$0xf]
    %v219 = vld [vmem:[#allocation7 + $0x14] sm:$0xf]
    %v220 = vld [vmem:[#allocation7 + $0x18] sm:$0xf]
    %v221 = vld [vmem:[#allocation7 + $0x1c] sm:$0xf]
    %v222 = vld [vmem:[#allocation7 + $0x20] sm:$0xf]
    %v223 = vld [vmem:[#allocation7 + $0x24] sm:$0xf]
    %v224 = vld [vmem:[#allocation7 + $0x28] sm:$0xf]
    %v225 = vld [vmem:[#allocation7 + $0x2c] sm:$0xf]
    %v226 = vld [vmem:[#allocation7 + $0x30] sm:$0xf]
    %v227 = vld [vmem:[#allocation7 + $0x34] sm:$0xf]
    %v228 = vld [vmem:[#allocation7 + $0x38] sm:$0xf]
    %v229 = vld [vmem:[#allocation7 + $0x3c] sm:$0xf]
    %v230 = vld [vmem:[%s4] sm:$0x1]
    %v232 = vlaneseq
    %v233 = vshrl.u32 %v232, 7
    %v234 = vsub.s32 0, %v233
    %v235 = vrot.slane %v230, %v234
    %v253 = vunpack.c.l.b16 %v214
    %v254 = vunpack.c.l.b16 %v215
    %v255 = vunpack.c.l.b16 %v216
    %v256 = vunpack.c.l.b16 %v217
    %v257 = vunpack.c.l.b16 %v218
    %v258 = vunpack.c.l.b16 %v219
    %v259 = vunpack.c.l.b16 %v220
    %v260 = vunpack.c.l.b16 %v221
    %v261 = vunpack.c.l.b16 %v222
    %v262 = vunpack.c.l.b16 %v223
    %v263 = vunpack.c.l.b16 %v224
    %v264 = vunpack.c.l.b16 %v225
    %v265 = vunpack.c.l.b16 %v226
    %v266 = vunpack.c.l.b16 %v227
    %v267 = vunpack.c.l.b16 %v228
    %v268 = vunpack.c.l.b16 %v229
    %v269 = vpack.c.b16 %v254, %v253
    %v270 = vpack.c.b16 %v256, %v255
    %v271 = vpack.c.b16 %v258, %v257
    %v272 = vpack.c.b16 %v260, %v259
    %v273 = vpack.c.b16 %v262, %v261
    %v274 = vpack.c.b16 %v264, %v263
    %v275 = vpack.c.b16 %v266, %v265
    %v276 = vpack.c.b16 %v268, %v267
    %285 = vmatprep.subr.bf16.mxu0 0
    %286 = vmatpush1.bf16.msra.mxu0 %v269
    %287 = vmatprep.subr.bf16.mxu0 0
    %288 = vmatpush1.bf16.msra.mxu0 %v270
    %289 = vmatprep.subr.bf16.mxu0 0
    %290 = vmatpush1.bf16.msra.mxu0 %v271
    %291 = vmatprep.subr.bf16.mxu0 0
    %292 = vmatpush1.bf16.msra.mxu0 %v272
    %293 = vmatprep.subr.bf16.mxu0 0
    %294 = vmatpush1.bf16.msra.mxu0 %v273
    %295 = vmatprep.subr.bf16.mxu0 0
    %296 = vmatpush1.bf16.msra.mxu0 %v274
    %297 = vmatprep.subr.bf16.mxu0 0
    %298 = vmatpush1.bf16.msra.mxu0 %v275
    %299 = vmatprep.subr.bf16.mxu0 0
    %300 = vmatpush1.bf16.msra.mxu0 %v276
    %301 = vmatprep.subr.bf16.mxu0 0
    %302 = vmatpush1.bf16.msra.mxu0 0
    %303 = vmatprep.subr.bf16.mxu0 0
    %304 = vmatpush1.bf16.msra.mxu0 0
    %305 = vmatprep.subr.bf16.mxu0 0
    %306 = vmatpush1.bf16.msra.mxu0 0
    %307 = vmatprep.subr.bf16.mxu0 0
    %308 = vmatpush1.bf16.msra.mxu0 0
    %309 = vmatprep.subr.bf16.mxu0 0
    %310 = vmatpush1.bf16.msra.mxu0 0
    %311 = vmatprep.subr.bf16.mxu0 0
    %312 = vmatpush1.bf16.msra.mxu0 0
    %313 = vmatprep.subr.bf16.mxu0 0
    %314 = vmatpush1.bf16.msra.mxu0 0
    %315 = vmatprep.subr.bf16.mxu0 0
    %316 = vmatpush1.bf16.msra.mxu0 0
    %317 = vmatprep.mubr.bf16.mxu0 0
    %318 = vmatmul.mubr.bf16.gmra.mrb[0].mxu0 %v213
    %v319 = vpop.f32.mrb[0].mxu0
    %v320 = vadd.f32 %v235, %v319
    %v321 = vpop.f32.mrb[0].mxu0
    %v322 = vpop.f32.mrb[0].mxu0
    %v323 = vadd.f32 %v235, %v322
    %v324 = vpop.f32.mrb[0].mxu0
    %325 = vdwg.mxu0
    %v326 = vmul.f32 %v320, 0.5
    %v327 = vmul.f32 %v323, 0.5
    %v328 = vmul.f32 %v320, 0.70710677
    %v329 = vmul.f32 %v323, 0.70710677
    %v330 = verf.f32.pop %v328
    %v331 = verf.f32.pop %v329
    %v332 = vadd.f32 %v330, 1.0
    %v333 = vadd.f32 %v331, 1.0
    %v334 = vmul.f32 %v326, %v332
    %v335 = vmul.f32 %v327, %v333
    %v336 = vpack.c.bf16 %v335, %v334
    %v337 = vld [vmem:[#allocation8] sm:$0xf]
    %v338 = vld [vmem:[#allocation8 + $0x4] sm:$0xf]
    %v339 = vld [vmem:[#allocation8 + $0x8] sm:$0xf]
    %v340 = vld [vmem:[#allocation8 + $0xc] sm:$0xf]
    %v341 = vld [vmem:[#allocation8 + $0x10] sm:$0xf]
    %v342 = vld [vmem:[#allocation8 + $0x14] sm:$0xf]
    %v343 = vld [vmem:[#allocation8 + $0x18] sm:$0xf]
    %v344 = vld [vmem:[#allocation8 + $0x1c] sm:$0xf]
    %v345 = vld [vmem:[#allocation8 + $0x20] sm:$0xf]
    %v346 = vld [vmem:[#allocation8 + $0x24] sm:$0xf]
    %v347 = vld [vmem:[#allocation8 + $0x28] sm:$0xf]
    %v348 = vld [vmem:[#allocation8 + $0x2c] sm:$0xf]
    %v349 = vld [vmem:[#allocation8 + $0x30] sm:$0xf]
    %v350 = vld [vmem:[#allocation8 + $0x34] sm:$0xf]
    %v351 = vld [vmem:[#allocation8 + $0x38] sm:$0xf]
    %v352 = vld [vmem:[#allocation8 + $0x3c] sm:$0xf]
    %v353 = vld [vmem:[%s6] sm:$0x1]
    %v355 = vlaneseq
    %v356 = vshrl.u32 %v355, 7
    %v357 = vsub.s32 0, %v356
    %v358 = vrot.slane %v353, %v357
    %v376 = vunpack.c.l.b16 %v337
    %v377 = vunpack.c.l.b16 %v338
    %v378 = vunpack.c.l.b16 %v339
    %v379 = vunpack.c.l.b16 %v340
    %v380 = vunpack.c.l.b16 %v341
    %v381 = vunpack.c.l.b16 %v342
    %v382 = vunpack.c.l.b16 %v343
    %v383 = vunpack.c.l.b16 %v344
    %v384 = vunpack.c.l.b16 %v345
    %v385 = vunpack.c.l.b16 %v346
    %v386 = vunpack.c.l.b16 %v347
    %v387 = vunpack.c.l.b16 %v348
    %v388 = vunpack.c.l.b16 %v349
    %v389 = vunpack.c.l.b16 %v350
    %v390 = vunpack.c.l.b16 %v351
    %v391 = vunpack.c.l.b16 %v352
    %v392 = vpack.c.b16 %v377, %v376
    %v393 = vpack.c.b16 %v379, %v378
    %v394 = vpack.c.b16 %v381, %v380
    %v395 = vpack.c.b16 %v383, %v382
    %v396 = vpack.c.b16 %v385, %v384
    %v397 = vpack.c.b16 %v387, %v386
    %v398 = vpack.c.b16 %v389, %v388
    %v399 = vpack.c.b16 %v391, %v390
    %408 = vmatprep.subr.bf16.mxu0 0
    %409 = vmatpush1.bf16.msra.mxu0 %v392
    %410 = vmatprep.subr.bf16.mxu0 0
    %411 = vmatpush1.bf16.msra.mxu0 %v393
    %412 = vmatprep.subr.bf16.mxu0 0
    %413 = vmatpush1.bf16.msra.mxu0 %v394
    %414 = vmatprep.subr.bf16.mxu0 0
    %415 = vmatpush1.bf16.msra.mxu0 %v395
    %416 = vmatprep.subr.bf16.mxu0 0
    %417 = vmatpush1.bf16.msra.mxu0 %v396
    %418 = vmatprep.subr.bf16.mxu0 0
    %419 = vmatpush1.bf16.msra.mxu0 %v397
    %420 = vmatprep.subr.bf16.mxu0 0
    %421 = vmatpush1.bf16.msra.mxu0 %v398
    %422 = vmatprep.subr.bf16.mxu0 0
    %423 = vmatpush1.bf16.msra.mxu0 %v399
    %424 = vmatprep.subr.bf16.mxu0 0
    %425 = vmatpush1.bf16.msra.mxu0 0
    %426 = vmatprep.subr.bf16.mxu0 0
    %427 = vmatpush1.bf16.msra.mxu0 0
    %428 = vmatprep.subr.bf16.mxu0 0
    %429 = vmatpush1.bf16.msra.mxu0 0
    %430 = vmatprep.subr.bf16.mxu0 0
    %431 = vmatpush1.bf16.msra.mxu0 0
    %432 = vmatprep.subr.bf16.mxu0 0
    %433 = vmatpush1.bf16.msra.mxu0 0
    %434 = vmatprep.subr.bf16.mxu0 0
    %435 = vmatpush1.bf16.msra.mxu0 0
    %436 = vmatprep.subr.bf16.mxu0 0
    %437 = vmatpush1.bf16.msra.mxu0 0
    %438 = vmatprep.subr.bf16.mxu0 0
    %439 = vmatpush1.bf16.msra.mxu0 0
    %440 = vmatprep.mubr.bf16.mxu0 0
    %441 = vmatmul.mubr.bf16.gmra.mrb[0].mxu0 %v336
    %v442 = vpop.f32.mrb[0].mxu0
    %v443 = vadd.f32 %v358, %v442
    %v444 = vpop.f32.mrb[0].mxu0
    %v445 = vpop.f32.mrb[0].mxu0
    %v446 = vadd.f32 %v358, %v445
    %v447 = vpop.f32.mrb[0].mxu0
    %448 = vdwg.mxu0
    %449 = vst [vmem:[#allocation10] sm:$0xff] %v443
    %450 = vst [vmem:[#allocation10 + $0x8] sm:$0xff] %v446
    // Predicated region
    $region46: #{tpu_custom_call.1} parent=1 // pred_check
      _
    $region47: #{tpu_custom_call.1} parent=1 // pred_check_branch
      %452 = sbr.rel (0) target = $region49
    $region48: #{tpu_custom_call.1} parent=1 // pred_region
      %s454 = ssub.s32 256, 256
      %455 = vsyncadd [#allocation4], %s454
      %s456 = sshll.u32 [#allocation10], 4
      %s457 = int_to_ptr.vmem [resolvable:$true] %s456
      %462 = dma.vmem_to_hbm [thread:$0]  %s457, 256, %s7, [#allocation4], 128, 128, 8
    $region49: #{tpu_custom_call.1} parent=1 // pred_fallthru
      _
    // Predicated region
    $region50: #{tpu_custom_call.1} parent=1 // pred_check
      _
    $region51: #{tpu_custom_call.1} parent=1 // pred_check_branch
      %464 = sbr.rel (0) target = $region53
    $region52: #{tpu_custom_call.1} parent=1 // pred_region
      %465 = dma.done [#allocation4], 256
    $region53: #{tpu_custom_call.1} parent=1 // pred_fallthru
      _
    %466 = vsyncpa [#allocation3], 1
    %467 = vsyncpa [#allocation6], 1
    %468 = vsyncpa [#allocation9], 1
    %469 = vsyncpa [#allocation4], 1

// kernel: tpu_custom_call.1
$region0: #{tpu_custom_call.1}
  #allocation0 [shape = 'u32[]', space=smem, size = 0x4, offset = 0x4, fixed_abs, tag = 'smem constant byte address 0x4 - core index']
  #allocation1 [shape = 'u32[144,128]{1,0:T(1,128)}', space=vmem, size = 0x12000, scoped, tag = 'internal scratch']
  %s0 = inlined_call_operand.hbm [shape: bf16[16,128], index: 0, kind: input, shape index: {}]
  %s1 = inlined_call_operand.hbm [shape: bf16[128,128], index: 1, kind: input, shape index: {}]
  %s2 = inlined_call_operand.vmem [shape: f32[1,128], index: 2, kind: input, shape index: {}]
  %s3 = inlined_call_operand.hbm [shape: bf16[128,128], index: 3, kind: input, shape index: {}]
  %s4 = inlined_call_operand.vmem [shape: f32[1,128], index: 4, kind: input, shape index: {}]
  %s5 = inlined_call_operand.hbm [shape: bf16[128,128], index: 5, kind: input, shape index: {}]
  %s6 = inlined_call_operand.vmem [shape: f32[1,128], index: 6, kind: input, shape index: {}]
  %s7 = inlined_call_operand.hbm [shape: f32[16,128], index: 7, kind: output, shape index: {}]
  %s8 = sld [smem:[#allocation0]]
  $region54: #{tpu_custom_call.1} parent=0
    _
  %s10 = ssub.s32 1, %s8
  %s11 = scalar_select 0, %s10, %s8
  $region1: #{tpu_custom_call.1} parent=0
    #allocation2 [shape = 'u8[4096]{0}', space=vmem, size = 0x1000, scoped, tag = 'input window, operand 0, single buffered']
    #allocation3 [shape = 's32[1]{0}', space=sflag, size = 0x4, scoped, tag = 'scoped memory for tpu_custom_call.1']
    #allocation4 [shape = 's32[1]{0}', space=sflag, size = 0x4, scoped, tag = 'scoped memory for tpu_custom_call.1']
    #allocation5 [shape = 'u8[32768]{0}', space=vmem, size = 0x8000, scoped, tag = 'input window, operand 1, single buffered']
    #allocation6 [shape = 's32[1]{0}', space=sflag, size = 0x4, scoped, tag = 'scoped memory for tpu_custom_call.1']
    #allocation7 [shape = 'u8[32768]{0}', space=vmem, size = 0x8000, scoped, tag = 'input window, operand 3, single buffered']
    #allocation8 [shape = 'u8[32768]{0}', space=vmem, size = 0x8000, scoped, tag = 'input window, operand 5, single buffered']
    #allocation9 [shape = 's32[1]{0}', space=sflag, size = 0x4, scoped, tag = 'scoped memory for tpu_custom_call.1']
    #allocation10 [shape = 'u8[8192]{0}', space=vmem, size = 0x2000, scoped, tag = 'output window, operand 0, single buffered']
    %12 = vsyncpa [#allocation3], 0
    %13 = vsyncpa [#allocation6], 0
    %14 = vsyncpa [#allocation9], 0
    %15 = vsyncpa [#allocation4], 0
    // Predicated region
    $region2: #{tpu_custom_call.1} parent=1 // pred_check
      _
    $region3: #{tpu_custom_call.1} parent=1 // pred_check_branch
      %17 = sbr.rel (0) target = $region5
    $region4: #{tpu_custom_call.1} parent=1 // pred_region
      %s19 = ssub.s32 128, 128
      %20 = vsyncadd [#allocation3], %s19
      %s21 = sshll.u32 [#allocation2], 4
      %s22 = int_to_ptr.vmem [resolvable:$true] %s21
      %27 = dma.hbm_to_vmem [thread:$0]  %s0, 128, %s22, [#allocation3], 64, 64, 4
    $region5: #{tpu_custom_call.1} parent=1 // pred_fallthru
      _
    // Predicated region
    $region6: #{tpu_custom_call.1} parent=1 // pred_check
      _
    $region7: #{tpu_custom_call.1} parent=1 // pred_check_branch
      %29 = sbr.rel (0) target = $region9
    $region8: #{tpu_custom_call.1} parent=1 // pred_region
      %s31 = ssub.s32 1024, 1024
      %32 = vsyncadd [#allocation6], %s31
      %s33 = sshll.u32 [#allocation5], 4
      %s34 = int_to_ptr.vmem [resolvable:$true] %s33
      %39 = dma.hbm_to_vmem [thread:$0]  %s1, 1024, %s34, [#allocation6], 64, 64, 4
    $region9: #{tpu_custom_call.1} parent=1 // pred_fallthru
      _
    // Predicated region
    $region10: #{tpu_custom_call.1} parent=1 // pred_check
      _
    $region11: #{tpu_custom_call.1} parent=1 // pred_check_branch
      %41 = sbr.rel (0) target = $region13
    $region12: #{tpu_custom_call.1} parent=1 // pred_region
      _
    $region13: #{tpu_custom_call.1} parent=1 // pred_fallthru
      _
    // Predicated region
    $region14: #{tpu_custom_call.1} parent=1 // pred_check
      _
    $region15: #{tpu_custom_call.1} parent=1 // pred_check_branch
      %43 = sbr.rel (0) target = $region17
    $region16: #{tpu_custom_call.1} parent=1 // pred_region
      %s45 = ssub.s32 1024, 1024
      %46 = vsyncadd [#allocation6], %s45
      %s47 = sshll.u32 [#allocation7], 4
      %s48 = int_to_ptr.vmem [resolvable:$true] %s47
      %53 = dma.hbm_to_vmem [thread:$0]  %s3, 1024, %s48, [#allocation6], 64, 64, 4
    $region17: #{tpu_custom_call.1} parent=1 // pred_fallthru
      _
    // Predicated region
    $region18: #{tpu_custom_call.1} parent=1 // pred_check
      _
    $region19: #{tpu_custom_call.1} parent=1 // pred_check_branch
      %55 = sbr.rel (0) target = $region21
    $region20: #{tpu_custom_call.1} parent=1 // pred_region
      _
    $region21: #{tpu_custom_call.1} parent=1 // pred_fallthru
      _
    // Predicated region
    $region22: #{tpu_custom_call.1} parent=1 // pred_check
      _
    $region23: #{tpu_custom_call.1} parent=1 // pred_check_branch
      %57 = sbr.rel (0) target = $region25
    $region24: #{tpu_custom_call.1} parent=1 // pred_region
      %s59 = ssub.s32 1024, 1024
      %60 = vsyncadd [#allocation9], %s59
      %s61 = sshll.u32 [#allocation8], 4
      %s62 = int_to_ptr.vmem [resolvable:$true] %s61
      %67 = dma.hbm_to_vmem [thread:$0]  %s5, 1024, %s62, [#allocation9], 64, 64, 4
    $region25: #{tpu_custom_call.1} parent=1 // pred_fallthru
      _
    // Predicated region
    $region26: #{tpu_custom_call.1} parent=1 // pred_check
      _
    $region27: #{tpu_custom_call.1} parent=1 // pred_check_branch
      %69 = sbr.rel (0) target = $region29
    $region28: #{tpu_custom_call.1} parent=1 // pred_region
      _
    $region29: #{tpu_custom_call.1} parent=1 // pred_fallthru
      _
    // Predicated region
    $region30: #{tpu_custom_call.1} parent=1 // pred_check
      _
    $region31: #{tpu_custom_call.1} parent=1 // pred_check_branch
      %71 = sbr.rel (0) target = $region33
    $region32: #{tpu_custom_call.1} parent=1 // pred_region
      %72 = dma.done [#allocation3], 128
    $region33: #{tpu_custom_call.1} parent=1 // pred_fallthru
      _
    // Predicated region
    $region34: #{tpu_custom_call.1} parent=1 // pred_check
      _
    $region35: #{tpu_custom_call.1} parent=1 // pred_check_branch
      %74 = sbr.rel (0) target = $region37
    $region36: #{tpu_custom_call.1} parent=1 // pred_region
      %75 = dma.done [#allocation6], 1024
    $region37: #{tpu_custom_call.1} parent=1 // pred_fallthru
      _
    // Predicated region
    $region38: #{tpu_custom_call.1} parent=1 // pred_check
      _
    $region39: #{tpu_custom_call.1} parent=1 // pred_check_branch
      %77 = sbr.rel (0) target = $region41
    $region40: #{tpu_custom_call.1} parent=1 // pred_region
      %78 = dma.done [#allocation6], 1024
    $region41: #{tpu_custom_call.1} parent=1 // pred_fallthru
      _
    // Predicated region
    $region42: #{tpu_custom_call.1} parent=1 // pred_check
      _
    $region43: #{tpu_custom_call.1} parent=1 // pred_check_branch
      %80 = sbr.rel (0) target = $region45
    $region44: #{tpu_custom_call.1} parent=1 // pred_region
      %81 = dma.done [#allocation9], 1024
    $region45: #{tpu_custom_call.1} parent=1 // pred_fallthru
      _
    %v83 = vld [vmem:[#allocation2] sm:$0xf]
    %v84 = vld [vmem:[#allocation2 + $0x4] sm:$0xf]
    %v85 = vld [vmem:[#allocation5] sm:$0xf]
    %v86 = vld [vmem:[#allocation5 + $0x4] sm:$0xf]
    %v87 = vld [vmem:[#allocation5 + $0x8] sm:$0xf]
    %v88 = vld [vmem:[#allocation5 + $0xc] sm:$0xf]
    %v89 = vld [vmem:[#allocation5 + $0x10] sm:$0xf]
    %v90 = vld [vmem:[#allocation5 + $0x14] sm:$0xf]
    %v91 = vld [vmem:[#allocation5 + $0x18] sm:$0xf]
    %v92 = vld [vmem:[#allocation5 + $0x1c] sm:$0xf]
    %v93 = vld [vmem:[#allocation5 + $0x20] sm:$0xf]
    %v94 = vld [vmem:[#allocation5 + $0x24] sm:$0xf]
    %v95 = vld [vmem:[#allocation5 + $0x28] sm:$0xf]
    %v96 = vld [vmem:[#allocation5 + $0x2c] sm:$0xf]
    %v97 = vld [vmem:[#allocation5 + $0x30] sm:$0xf]
    %v98 = vld [vmem:[#allocation5 + $0x34] sm:$0xf]
    %v99 = vld [vmem:[#allocation5 + $0x38] sm:$0xf]
    %v100 = vld [vmem:[#allocation5 + $0x3c] sm:$0xf]
    %v101 = vld [vmem:[%s2] sm:$0x1]
    %v103 = vlaneseq
    %v104 = vshrl.u32 %v103, 7
    %v105 = vsub.s32 0, %v104
    %v106 = vrot.slane %v101, %v105
    %v110 = vunpack.c.l.b16 %v83
    %v111 = vunpack.c.l.b16 %v84
    %v112 = vpack.c.b16 %v111, %v110
    %v130 = vunpack.c.l.b16 %v85
    %v131 = vunpack.c.l.b16 %v86
    %v132 = vunpack.c.l.b16 %v87
    %v133 = vunpack.c.l.b16 %v88
    %v134 = vunpack.c.l.b16 %v89
    %v135 = vunpack.c.l.b16 %v90
    %v136 = vunpack.c.l.b16 %v91
    %v137 = vunpack.c.l.b16 %v92
    %v138 = vunpack.c.l.b16 %v93
    %v139 = vunpack.c.l.b16 %v94
    %v140 = vunpack.c.l.b16 %v95
    %v141 = vunpack.c.l.b16 %v96
    %v142 = vunpack.c.l.b16 %v97
    %v143 = vunpack.c.l.b16 %v98
    %v144 = vunpack.c.l.b16 %v99
    %v145 = vunpack.c.l.b16 %v100
    %v146 = vpack.c.b16 %v131, %v130
    %v147 = vpack.c.b16 %v133, %v132
    %v148 = vpack.c.b16 %v135, %v134
    %v149 = vpack.c.b16 %v137, %v136
    %v150 = vpack.c.b16 %v139, %v138
    %v151 = vpack.c.b16 %v141, %v140
    %v152 = vpack.c.b16 %v143, %v142
    %v153 = vpack.c.b16 %v145, %v144
    %162 = vmatprep.subr.bf16.mxu0 0
    %163 = vmatpush1.bf16.msra.mxu0 %v146
    %164 = vmatprep.subr.bf16.mxu0 0
    %165 = vmatpush1.bf16.msra.mxu0 %v147
    %166 = vmatprep.subr.bf16.mxu0 0
    %167 = vmatpush1.bf16.msra.mxu0 %v148
    %168 = vmatprep.subr.bf16.mxu0 0
    %169 = vmatpush1.bf16.msra.mxu0 %v149
    %170 = vmatprep.subr.bf16.mxu0 0
    %171 = vmatpush1.bf16.msra.mxu0 %v150
    %172 = vmatprep.subr.bf16.mxu0 0
    %173 = vmatpush1.bf16.msra.mxu0 %v151
    %174 = vmatprep.subr.bf16.mxu0 0
    %175 = vmatpush1.bf16.msra.mxu0 %v152
    %176 = vmatprep.subr.bf16.mxu0 0
    %177 = vmatpush1.bf16.msra.mxu0 %v153
    %178 = vmatprep.subr.bf16.mxu0 0
    %179 = vmatpush1.bf16.msra.mxu0 0
    %180 = vmatprep.subr.bf16.mxu0 0
    %181 = vmatpush1.bf16.msra.mxu0 0
    %182 = vmatprep.subr.bf16.mxu0 0
    %183 = vmatpush1.bf16.msra.mxu0 0
    %184 = vmatprep.subr.bf16.mxu0 0
    %185 = vmatpush1.bf16.msra.mxu0 0
    %186 = vmatprep.subr.bf16.mxu0 0
    %187 = vmatpush1.bf16.msra.mxu0 0
    %188 = vmatprep.subr.bf16.mxu0 0
    %189 = vmatpush1.bf16.msra.mxu0 0
    %190 = vmatprep.subr.bf16.mxu0 0
    %191 = vmatpush1.bf16.msra.mxu0 0
    %192 = vmatprep.subr.bf16.mxu0 0
    %193 = vmatpush1.bf16.msra.mxu0 0
    %194 = vmatprep.mubr.bf16.mxu0 0
    %195 = vmatmul.mubr.bf16.gmra.mrb[0].mxu0 %v112
    %v196 = vpop.f32.mrb[0].mxu0
    %v197 = vadd.f32 %v106, %v196
    %v198 = vpop.f32.mrb[0].mxu0
    %v199 = vpop.f32.mrb[0].mxu0
    %v200 = vadd.f32 %v106, %v199
    %v201 = vpop.f32.mrb[0].mxu0
    %202 = vdwg.mxu0
    %v203 = vmul.f32 %v197, 0.5
    %v204 = vmul.f32 %v200, 0.5
    %v205 = vmul.f32 %v197, 0.70710677
    %v206 = vmul.f32 %v200, 0.70710677
    %v207 = verf.f32.pop %v205
    %v208 = verf.f32.pop %v206
    %v209 = vadd.f32 %v207, 1.0
    %v210 = vadd.f32 %v208, 1.0
    %v211 = vmul.f32 %v203, %v209
    %v212 = vmul.f32 %v204, %v210
    %v213 = vpack.c.bf16 %v212, %v211
    %v214 = vld [vmem:[#allocation7] sm:$0xf]
    %v215 = vld [vmem:[#allocation7 + $0x4] sm:$0xf]
    %v216 = vld [vmem:[#allocation7 + $0x8] sm:$0xf]
    %v217 = vld [vmem:[#allocation7 + $0xc] sm:$0xf]
    %v218 = vld [vmem:[#allocation7 + $0x10] sm:$0xf]
    %v219 = vld [vmem:[#allocation7 + $0x14] sm:$0xf]
    %v220 = vld [vmem:[#allocation7 + $0x18] sm:$0xf]
    %v221 = vld [vmem:[#allocation7 + $0x1c] sm:$0xf]
    %v222 = vld [vmem:[#allocation7 + $0x20] sm:$0xf]
    %v223 = vld [vmem:[#allocation7 + $0x24] sm:$0xf]
    %v224 = vld [vmem:[#allocation7 + $0x28] sm:$0xf]
    %v225 = vld [vmem:[#allocation7 + $0x2c] sm:$0xf]
    %v226 = vld [vmem:[#allocation7 + $0x30] sm:$0xf]
    %v227 = vld [vmem:[#allocation7 + $0x34] sm:$0xf]
    %v228 = vld [vmem:[#allocation7 + $0x38] sm:$0xf]
    %v229 = vld [vmem:[#allocation7 + $0x3c] sm:$0xf]
    %v230 = vld [vmem:[%s4] sm:$0x1]
    %v232 = vlaneseq
    %v233 = vshrl.u32 %v232, 7
    %v234 = vsub.s32 0, %v233
    %v235 = vrot.slane %v230, %v234
    %v253 = vunpack.c.l.b16 %v214
    %v254 = vunpack.c.l.b16 %v215
    %v255 = vunpack.c.l.b16 %v216
    %v256 = vunpack.c.l.b16 %v217
    %v257 = vunpack.c.l.b16 %v218
    %v258 = vunpack.c.l.b16 %v219
    %v259 = vunpack.c.l.b16 %v220
    %v260 = vunpack.c.l.b16 %v221
    %v261 = vunpack.c.l.b16 %v222
    %v262 = vunpack.c.l.b16 %v223
    %v263 = vunpack.c.l.b16 %v224
    %v264 = vunpack.c.l.b16 %v225
    %v265 = vunpack.c.l.b16 %v226
    %v266 = vunpack.c.l.b16 %v227
    %v267 = vunpack.c.l.b16 %v228
    %v268 = vunpack.c.l.b16 %v229
    %v269 = vpack.c.b16 %v254, %v253
    %v270 = vpack.c.b16 %v256, %v255
    %v271 = vpack.c.b16 %v258, %v257
    %v272 = vpack.c.b16 %v260, %v259
    %v273 = vpack.c.b16 %v262, %v261
    %v274 = vpack.c.b16 %v264, %v263
    %v275 = vpack.c.b16 %v266, %v265
    %v276 = vpack.c.b16 %v268, %v267
    %285 = vmatprep.subr.bf16.mxu0 0
    %286 = vmatpush1.bf16.msra.mxu0 %v269
    %287 = vmatprep.subr.bf16.mxu0 0
    %288 = vmatpush1.bf16.msra.mxu0 %v270
    %289 = vmatprep.subr.bf16.mxu0 0
    %290 = vmatpush1.bf16.msra.mxu0 %v271
    %291 = vmatprep.subr.bf16.mxu0 0
    %292 = vmatpush1.bf16.msra.mxu0 %v272
    %293 = vmatprep.subr.bf16.mxu0 0
    %294 = vmatpush1.bf16.msra.mxu0 %v273
    %295 = vmatprep.subr.bf16.mxu0 0
    %296 = vmatpush1.bf16.msra.mxu0 %v274
    %297 = vmatprep.subr.bf16.mxu0 0
    %298 = vmatpush1.bf16.msra.mxu0 %v275
    %299 = vmatprep.subr.bf16.mxu0 0
    %300 = vmatpush1.bf16.msra.mxu0 %v276
    %301 = vmatprep.subr.bf16.mxu0 0
    %302 = vmatpush1.bf16.msra.mxu0 0
    %303 = vmatprep.subr.bf16.mxu0 0
    %304 = vmatpush1.bf16.msra.mxu0 0
    %305 = vmatprep.subr.bf16.mxu0 0
    %306 = vmatpush1.bf16.msra.mxu0 0
    %307 = vmatprep.subr.bf16.mxu0 0
    %308 = vmatpush1.bf16.msra.mxu0 0
    %309 = vmatprep.subr.bf16.mxu0 0
    %310 = vmatpush1.bf16.msra.mxu0 0
    %311 = vmatprep.subr.bf16.mxu0 0
    %312 = vmatpush1.bf16.msra.mxu0 0
    %313 = vmatprep.subr.bf16.mxu0 0
    %314 = vmatpush1.bf16.msra.mxu0 0
    %315 = vmatprep.subr.bf16.mxu0 0
    %316 = vmatpush1.bf16.msra.mxu0 0
    %317 = vmatprep.mubr.bf16.mxu0 0
    %318 = vmatmul.mubr.bf16.gmra.mrb[0].mxu0 %v213
    %v319 = vpop.f32.mrb[0].mxu0
    %v320 = vadd.f32 %v235, %v319
    %v321 = vpop.f32.mrb[0].mxu0
    %v322 = vpop.f32.mrb[0].mxu0
    %v323 = vadd.f32 %v235, %v322
    %v324 = vpop.f32.mrb[0].mxu0
    %325 = vdwg.mxu0
    %v326 = vmul.f32 %v320, 0.5
    %v327 = vmul.f32 %v323, 0.5
    %v328 = vmul.f32 %v320, 0.70710677
    %v329 = vmul.f32 %v323, 0.70710677
    %v330 = verf.f32.pop %v328
    %v331 = verf.f32.pop %v329
    %v332 = vadd.f32 %v330, 1.0
    %v333 = vadd.f32 %v331, 1.0
    %v334 = vmul.f32 %v326, %v332
    %v335 = vmul.f32 %v327, %v333
    %v336 = vpack.c.bf16 %v335, %v334
    %v337 = vld [vmem:[#allocation8] sm:$0xf]
    %v338 = vld [vmem:[#allocation8 + $0x4] sm:$0xf]
    %v339 = vld [vmem:[#allocation8 + $0x8] sm:$0xf]
    %v340 = vld [vmem:[#allocation8 + $0xc] sm:$0xf]
    %v341 = vld [vmem:[#allocation8 + $0x10] sm:$0xf]
    %v342 = vld [vmem:[#allocation8 + $0x14] sm:$0xf]
    %v343 = vld [vmem:[#allocation8 + $0x18] sm:$0xf]
    %v344 = vld [vmem:[#allocation8 + $0x1c] sm:$0xf]
    %v345 = vld [vmem:[#allocation8 + $0x20] sm:$0xf]
    %v346 = vld [vmem:[#allocation8 + $0x24] sm:$0xf]
    %v347 = vld [vmem:[#allocation8 + $0x28] sm:$0xf]
    %v348 = vld [vmem:[#allocation8 + $0x2c] sm:$0xf]
    %v349 = vld [vmem:[#allocation8 + $0x30] sm:$0xf]
    %v350 = vld [vmem:[#allocation8 + $0x34] sm:$0xf]
    %v351 = vld [vmem:[#allocation8 + $0x38] sm:$0xf]
    %v352 = vld [vmem:[#allocation8 + $0x3c] sm:$0xf]
    %v353 = vld [vmem:[%s6] sm:$0x1]
    %v355 = vlaneseq
    %v356 = vshrl.u32 %v355, 7
    %v357 = vsub.s32 0, %v356
    %v358 = vrot.slane %v353, %v357
    %v376 = vunpack.c.l.b16 %v337
    %v377 = vunpack.c.l.b16 %v338
    %v378 = vunpack.c.l.b16 %v339
    %v379 = vunpack.c.l.b16 %v340
    %v380 = vunpack.c.l.b16 %v341
    %v381 = vunpack.c.l.b16 %v342
    %v382 = vunpack.c.l.b16 %v343
    %v383 = vunpack.c.l.b16 %v344
    %v384 = vunpack.c.l.b16 %v345
    %v385 = vunpack.c.l.b16 %v346
    %v386 = vunpack.c.l.b16 %v347
    %v387 = vunpack.c.l.b16 %v348
    %v388 = vunpack.c.l.b16 %v349
    %v389 = vunpack.c.l.b16 %v350
    %v390 = vunpack.c.l.b16 %v351
    %v391 = vunpack.c.l.b16 %v352
    %v392 = vpack.c.b16 %v377, %v376
    %v393 = vpack.c.b16 %v379, %v378
    %v394 = vpack.c.b16 %v381, %v380
    %v395 = vpack.c.b16 %v383, %v382
    %v396 = vpack.c.b16 %v385, %v384
    %v397 = vpack.c.b16 %v387, %v386
    %v398 = vpack.c.b16 %v389, %v388
    %v399 = vpack.c.b16 %v391, %v390
    %408 = vmatprep.subr.bf16.mxu0 0
    %409 = vmatpush1.bf16.msra.mxu0 %v392
    %410 = vmatprep.subr.bf16.mxu0 0
    %411 = vmatpush1.bf16.msra.mxu0 %v393
    %412 = vmatprep.subr.bf16.mxu0 0
    %413 = vmatpush1.bf16.msra.mxu0 %v394
    %414 = vmatprep.subr.bf16.mxu0 0
    %415 = vmatpush1.bf16.msra.mxu0 %v395
    %416 = vmatprep.subr.bf16.mxu0 0
    %417 = vmatpush1.bf16.msra.mxu0 %v396
    %418 = vmatprep.subr.bf16.mxu0 0
    %419 = vmatpush1.bf16.msra.mxu0 %v397
    %420 = vmatprep.subr.bf16.mxu0 0
    %421 = vmatpush1.bf16.msra.mxu0 %v398
    %422 = vmatprep.subr.bf16.mxu0 0
    %423 = vmatpush1.bf16.msra.mxu0 %v399
    %424 = vmatprep.subr.bf16.mxu0 0
    %425 = vmatpush1.bf16.msra.mxu0 0
    %426 = vmatprep.subr.bf16.mxu0 0
    %427 = vmatpush1.bf16.msra.mxu0 0
    %428 = vmatprep.subr.bf16.mxu0 0
    %429 = vmatpush1.bf16.msra.mxu0 0
    %430 = vmatprep.subr.bf16.mxu0 0
    %431 = vmatpush1.bf16.msra.mxu0 0
    %432 = vmatprep.subr.bf16.mxu0 0
    %433 = vmatpush1.bf16.msra.mxu0 0
    %434 = vmatprep.subr.bf16.mxu0 0
    %435 = vmatpush1.bf16.msra.mxu0 0
    %436 = vmatprep.subr.bf16.mxu0 0
    %437 = vmatpush1.bf16.msra.mxu0 0
    %438 = vmatprep.subr.bf16.mxu0 0
    %439 = vmatpush1.bf16.msra.mxu0 0
    %440 = vmatprep.mubr.bf16.mxu0 0
    %441 = vmatmul.mubr.bf16.gmra.mrb[0].mxu0 %v336
    %v442 = vpop.f32.mrb[0].mxu0
    %v443 = vadd.f32 %v358, %v442
    %v444 = vpop.f32.mrb[0].mxu0
    %v445 = vpop.f32.mrb[0].mxu0
    %v446 = vadd.f32 %v358, %v445
    %v447 = vpop.f32.mrb[0].mxu0
    %448 = vdwg.mxu0
    %449 = vst [vmem:[#allocation10] sm:$0xff] %v443
    %450 = vst [vmem:[#allocation10 + $0x8] sm:$0xff] %v446
    // Predicated region
    $region46: #{tpu_custom_call.1} parent=1 // pred_check
      _
    $region47: #{tpu_custom_call.1} parent=1 // pred_check_branch
      %452 = sbr.rel (0) target = $region49
    $region48: #{tpu_custom_call.1} parent=1 // pred_region
      %s454 = ssub.s32 256, 256
      %455 = vsyncadd [#allocation4], %s454
      %s456 = sshll.u32 [#allocation10], 4
      %s457 = int_to_ptr.vmem [resolvable:$true] %s456
      %462 = dma.vmem_to_hbm [thread:$0]  %s457, 256, %s7, [#allocation4], 128, 128, 8
    $region49: #{tpu_custom_call.1} parent=1 // pred_fallthru
      _
    // Predicated region
    $region50: #{tpu_custom_call.1} parent=1 // pred_check
      _
    $region51: #{tpu_custom_call.1} parent=1 // pred_check_branch
      %464 = sbr.rel (0) target = $region53
    $region52: #{tpu_custom_call.1} parent=1 // pred_region
      %465 = dma.done [#allocation4], 256
    $region53: #{tpu_custom_call.1} parent=1 // pred_fallthru
      _
    %466 = vsyncpa [#allocation3], 1
    %467 = vsyncpa [#allocation6], 1
    %468 = vsyncpa [#allocation9], 1
    %469 = vsyncpa [#allocation4], 1

</llo_original>
